<compile_context>
chip_gen: v7x
topology: tpu7x:2x2x1
jax: 0.10.0
libtpu: 0.0.40
codegen_flags: <defaults>
</compile_context>

<pallas_src>
import jax
import jax.numpy as jnp
from jax.experimental import pallas as pl
from jax.experimental.pallas import tpu as pltpu


def _round_up(x, m):
    return ((x + m - 1) // m) * m


def critic_kernel(obs_ref, act_ref,
                  w1o_ref, w1a_ref, b1_ref,
                  w2_ref, b2_ref,
                  w3_ref, b3_ref,
                  out_ref):
    # encoder + torso layer 1, (feature, batch) oriented:
    #   h (H, tb) = W1o^T @ obs^T + W1a^T @ act^T + b1
    # (concat(obs, act) @ W1 expressed as two partial matmuls so obs/act stream straight
    #  from HBM; RHS-transposed contraction keeps the batch on lanes.)
    h = (jax.lax.dot_general(w1o_ref[...], obs_ref[...],
                             dimension_numbers=(((1,), (1,)), ((), ())),
                             preferred_element_type=jnp.float32)
         + jax.lax.dot_general(w1a_ref[...], act_ref[...],
                               dimension_numbers=(((1,), (1,)), ((), ())),
                               preferred_element_type=jnp.float32)
         + b1_ref[...])                                   # b1: (H, 1) broadcast over lanes
    h = jnp.maximum(h, 0.0)                               # ReLU; stays f32 (VMEM-resident)

    # torso layer 2: W2^T (H, H) @ h (H, tb) + b2
    h = jnp.dot(w2_ref[...], h, preferred_element_type=jnp.float32) + b2_ref[...]
    h = jnp.maximum(h, 0.0)

    # head: w3 (1, H) @ h (H, tb) -> lane-dense (1, tb) row
    v = jnp.dot(w3_ref[...], h, preferred_element_type=jnp.float32)
    out_ref[...] = v + b3_ref[0]                          # b3: scalar from SMEM


def critic_forward(obs, act, params, *, block_batch=None, split_threshold=16384):
    """Critic forward pass. Returns values of shape (batch,), dtype float32."""
    w1o, w1a, b1, w2, b2, w3, b3 = params
    B, obs_dim = obs.shape
    act_dim = act.shape[1]
    hidden = w2.shape[0]
    in_itemsize = jnp.dtype(obs.dtype).itemsize

    # ---- batch-tile selection -------------------------------------------------------
    # Per-step data must dwarf the ~0.35 us grid overhead (HBM-bound kernel), so default
    # tiles are large; small batches stay a single lane-aligned tile; medium/large
    # batches get >= 2 steps so both v7x TensorCores participate.
    if block_batch is None:
        block_batch = 65536 if in_itemsize <= 2 else 32768
    if B > block_batch:
        tb = _round_up(block_batch, 128)
    elif B >= split_threshold:
        tb = _round_up((B + 1) // 2, 128)      # >= 2 grid steps (megacore on v7x)
    else:
        tb = _round_up(B, 128)                 # single tile, lane-dense output stores
    Bp = _round_up(B, tb)
    if Bp != B:
        obs = jnp.pad(obs, ((0, Bp - B), (0, 0)))
        act = jnp.pad(act, ((0, Bp - B), (0, 0)))
    grid = (Bp // tb,)

    # ---- parameter layout for the (feature, batch) orientation (tiny, wrapper-side) --
    w1oT = jnp.transpose(w1o)                              # (H, obs_dim), stream dtype
    w1aT = jnp.transpose(w1a)                              # (H, act_dim), stream dtype
    b1c = b1.reshape(hidden, 1).astype(jnp.float32)
    w2T = jnp.transpose(w2).astype(jnp.float32)            # (H, H)
    b2c = b2.reshape(hidden, 1).astype(jnp.float32)
    w3r = w3.reshape(1, hidden).astype(jnp.float32)
    b3s = b3.reshape((1,)).astype(jnp.float32)

    def resident(shape):                                   # weights: same block every step
        return pl.BlockSpec(shape, lambda i: (0, 0))

    weight_bytes = sum(int(p.size) * p.dtype.itemsize
                       for p in (w1oT, w1aT, b1c, w2T, b2c, w3r, b3s))
    cost = pl.CostEstimate(
        flops=2 * B * ((obs_dim + act_dim) * hidden + hidden * hidden + hidden),
        transcendentals=0,
        bytes_accessed=Bp * (obs_dim + act_dim) * in_itemsize + Bp * 4 + weight_bytes)

    # Scoped-VMEM budget: double-buffered obs/act/out tiles + resident params + margin.
    vmem_need = (2 * tb * (obs_dim + act_dim) * in_itemsize + 2 * tb * 4
                 + 2 * weight_bytes + (4 << 20))
    vmem_limit = int(min(max(vmem_need, 32 << 20), 64 << 20))

    out = pl.pallas_call(
        critic_kernel,
        out_shape=jax.ShapeDtypeStruct((1, Bp), jnp.float32),
        grid=grid,
        in_specs=[
            pl.BlockSpec((tb, obs_dim), lambda i: (i, 0)),   # obs tile (streamed)
            pl.BlockSpec((tb, act_dim), lambda i: (i, 0)),   # act tile (streamed)
            resident((hidden, obs_dim)),                     # W1[:obs_dim]^T
            resident((hidden, act_dim)),                     # W1[obs_dim:]^T
            resident((hidden, 1)),                           # b1
            resident((hidden, hidden)),                      # W2^T
            resident((hidden, 1)),                           # b2
            resident((1, hidden)),                           # w3 (row)
            pl.BlockSpec(memory_space=pltpu.SMEM),           # b3 scalar
        ],
        out_specs=pl.BlockSpec((1, tb), lambda i: (0, i)),   # lane-dense output slab
        compiler_params=pltpu.CompilerParams(
            dimension_semantics=("parallel",),
            vmem_limit_bytes=vmem_limit),
        cost_estimate=cost,
    )(obs, act, w1oT, w1aT, b1c, w2T, b2c, w3r, b3s)

    # PyTorch ValueHead returns shape (batch,) after squeezing the value dim.
    return out[0, :B]


def init_params(key, obs_dim, act_dim, hidden, dtype=jnp.float32):
    ks = jax.random.split(key, 7)
    scale = 0.1
    w1o = (scale * jax.random.normal(ks[0], (obs_dim, hidden))).astype(dtype)
    w1a = (scale * jax.random.normal(ks[1], (act_dim, hidden))).astype(dtype)
    b1 = (scale * jax.random.normal(ks[2], (hidden,))).astype(dtype)
    w2 = (scale * jax.random.normal(ks[3], (hidden, hidden))).astype(dtype)
    b2 = (scale * jax.random.normal(ks[4], (hidden,))).astype(dtype)
    w3 = (scale * jax.random.normal(ks[5], (hidden,))).astype(dtype)
    b3 = (scale * jax.random.normal(ks[6], (1,))).astype(dtype)
    return (w1o, w1a, b1, w2, b2, w3, b3)


def critic_ref(obs, act, params):
    # pure-JAX (f32) reference of the same forward pass
    w1o, w1a, b1, w2, b2, w3, b3 = [p.astype(jnp.float32) for p in params]
    x = jnp.concatenate([obs.astype(jnp.float32), act.astype(jnp.float32)], axis=-1)
    w1 = jnp.concatenate([w1o, w1a], axis=0)
    h = jnp.maximum(x @ w1 + b1, 0.0)
    h = jnp.maximum(h @ w2 + b2, 0.0)
    return h @ w3 + b3[0]


if __name__ == "__main__":
    B, OBS, ACT, HID = 2, 16, 8, 32

    key = jax.random.PRNGKey(0)
    k_obs, k_act, k_par = jax.random.split(key, 3)
    obs = jax.random.normal(k_obs, (B, OBS), jnp.float32)
    act = jax.random.normal(k_act, (B, ACT), jnp.float32)
    params = init_params(k_par, OBS, ACT, HID)

    # small-batch path (single tile)
    out = critic_forward(obs, act, params)
    jax.block_until_ready(out)
    ref = critic_ref(obs, act, params)
    assert out.shape == (B,)
    assert jnp.allclose(out, ref, atol=1e-5, rtol=1e-5)

    # multi-tile path (grid > 1, batch padding), f32
    B2 = 300
    k_obs2, k_act2 = jax.random.split(jax.random.PRNGKey(1), 2)
    obs2 = jax.random.normal(k_obs2, (B2, OBS), jnp.float32)
    act2 = jax.random.normal(k_act2, (B2, ACT), jnp.float32)
    out2 = critic_forward(obs2, act2, params, block_batch=128)
    jax.block_until_ready(out2)
    ref2 = critic_ref(obs2, act2, params)
    assert out2.shape == (B2,)
    assert jnp.allclose(out2, ref2, atol=1e-4, rtol=1e-4)

    # 2-way split path (exercises the >=2-grid-step megacore branch)
    out2b = critic_forward(obs2, act2, params, split_threshold=64)
    jax.block_until_ready(out2b)
    assert out2b.shape == (B2,)
    assert jnp.allclose(out2b, ref2, atol=1e-4, rtol=1e-4)

    # bf16-streamed variant (halves HBM traffic; f32 accumulation + f32 activations inside)
    params_bf16 = init_params(k_par, OBS, ACT, HID, dtype=jnp.bfloat16)
    obs_bf16 = obs2.astype(jnp.bfloat16)
    act_bf16 = act2.astype(jnp.bfloat16)
    out3 = critic_forward(obs_bf16, act_bf16, params_bf16, block_batch=128)
    jax.block_until_ready(out3)
    ref3 = critic_ref(obs_bf16, act_bf16, params_bf16)
    assert out3.shape == (B2,)
    assert jnp.allclose(out3, ref3, atol=5e-2, rtol=5e-2)

    print("KERNEL_OK")
</pallas_src>

<mosaic_0001>
module attributes {stable_mosaic.version = 11 : i64} {
  func.func @critic_kernel(%arg0: i32, %arg1: memref<128x16xf32, #tpu.memory_space<vmem>>, %arg2: memref<128x8xf32, #tpu.memory_space<vmem>>, %arg3: memref<32x16xf32, #tpu.memory_space<vmem>>, %arg4: memref<32x8xf32, #tpu.memory_space<vmem>>, %arg5: memref<32x1xf32, #tpu.memory_space<vmem>>, %arg6: memref<32x32xf32, #tpu.memory_space<vmem>>, %arg7: memref<32x1xf32, #tpu.memory_space<vmem>>, %arg8: memref<1x32xf32, #tpu.memory_space<vmem>>, %arg9: memref<1xf32, #tpu.memory_space<smem>>, %arg10: memref<1x128xf32, #tpu.memory_space<vmem>>) attributes {dimension_semantics = [#tpu.dimension_semantics<parallel>], iteration_bounds = array<i64: 1>, scalar_prefetch = 0 : i64, scratch_operands = 0 : i64, tpu.core_type = #tpu.core_type<tc>, window_params = [{transform_indices = @transform_0, window_bounds = array<i64: 128, 16>}, {transform_indices = @transform_1, window_bounds = array<i64: 128, 8>}, {pipeline_mode = #tpu.pipeline_mode<synchronous>, transform_indices = @transform_2, window_bounds = array<i64: 32, 16>}, {pipeline_mode = #tpu.pipeline_mode<synchronous>, transform_indices = @transform_3, window_bounds = array<i64: 32, 8>}, {pipeline_mode = #tpu.pipeline_mode<synchronous>, transform_indices = @transform_4, window_bounds = array<i64: 32, 1>}, {pipeline_mode = #tpu.pipeline_mode<synchronous>, transform_indices = @transform_5, window_bounds = array<i64: 32, 32>}, {pipeline_mode = #tpu.pipeline_mode<synchronous>, transform_indices = @transform_6, window_bounds = array<i64: 32, 1>}, {pipeline_mode = #tpu.pipeline_mode<synchronous>, transform_indices = @transform_7, window_bounds = array<i64: 1, 32>}, {transform_indices = @transform_8, window_bounds = array<i64: 1>}, {transform_indices = @transform_9, window_bounds = array<i64: 1, 128>}]} {
    %c0 = arith.constant 0 : index
    %c0_0 = arith.constant 0 : index
    %0 = vector.load %arg3[%c0, %c0_0] : memref<32x16xf32, #tpu.memory_space<vmem>>, vector<32x16xf32>
    %c0_1 = arith.constant 0 : index
    %c0_2 = arith.constant 0 : index
    %1 = vector.load %arg1[%c0_1, %c0_2] : memref<128x16xf32, #tpu.memory_space<vmem>>, vector<128x16xf32>
    %cst = arith.constant dense<0.000000e+00> : vector<32x128xf32>
    %2 = tpu.matmul %0, %1, %cst {dimension_numbers = #tpu.dot_dimension_numbers<[1], [1], [0], [0], [0, 0, 1, 0], [], []>} : vector<32x16xf32>, vector<128x16xf32>, vector<32x128xf32> -> vector<32x128xf32>
    %c0_3 = arith.constant 0 : index
    %c0_4 = arith.constant 0 : index
    %3 = vector.load %arg4[%c0_3, %c0_4] : memref<32x8xf32, #tpu.memory_space<vmem>>, vector<32x8xf32>
    %c0_5 = arith.constant 0 : index
    %c0_6 = arith.constant 0 : index
    %4 = vector.load %arg2[%c0_5, %c0_6] : memref<128x8xf32, #tpu.memory_space<vmem>>, vector<128x8xf32>
    %cst_7 = arith.constant dense<0.000000e+00> : vector<32x128xf32>
    %5 = tpu.matmul %3, %4, %cst_7 {dimension_numbers = #tpu.dot_dimension_numbers<[1], [1], [0], [0], [0, 0, 1, 0], [], []>} : vector<32x8xf32>, vector<128x8xf32>, vector<32x128xf32> -> vector<32x128xf32>
    %6 = arith.addf %2, %5 : vector<32x128xf32>
    %c0_8 = arith.constant 0 : index
    %c0_9 = arith.constant 0 : index
    %7 = vector.load %arg5[%c0_8, %c0_9] : memref<32x1xf32, #tpu.memory_space<vmem>>, vector<32x1xf32>
    %8 = vector.broadcast %7 : vector<32x1xf32> to vector<32x128xf32>
    %9 = arith.addf %6, %8 : vector<32x128xf32>
    %cst_10 = arith.constant 0.000000e+00 : f32
    %10 = vector.broadcast %cst_10 : f32 to vector<32x128xf32>
    %11 = arith.maximumf %9, %10 : vector<32x128xf32>
    %c0_11 = arith.constant 0 : index
    %c0_12 = arith.constant 0 : index
    %12 = vector.load %arg6[%c0_11, %c0_12] : memref<32x32xf32, #tpu.memory_space<vmem>>, vector<32x32xf32>
    %cst_13 = arith.constant dense<0.000000e+00> : vector<32x128xf32>
    %13 = tpu.matmul %12, %11, %cst_13 {dimension_numbers = #tpu.dot_dimension_numbers<[1], [0], [0], [1], [0, 0, 1, 1], [], []>} : vector<32x32xf32>, vector<32x128xf32>, vector<32x128xf32> -> vector<32x128xf32>
    %c0_14 = arith.constant 0 : index
    %c0_15 = arith.constant 0 : index
    %14 = vector.load %arg7[%c0_14, %c0_15] : memref<32x1xf32, #tpu.memory_space<vmem>>, vector<32x1xf32>
    %15 = vector.broadcast %14 : vector<32x1xf32> to vector<32x128xf32>
    %16 = arith.addf %13, %15 : vector<32x128xf32>
    %cst_16 = arith.constant 0.000000e+00 : f32
    %17 = vector.broadcast %cst_16 : f32 to vector<32x128xf32>
    %18 = arith.maximumf %16, %17 : vector<32x128xf32>
    %c0_17 = arith.constant 0 : index
    %c0_18 = arith.constant 0 : index
    %19 = vector.load %arg8[%c0_17, %c0_18] : memref<1x32xf32, #tpu.memory_space<vmem>>, vector<1x32xf32>
    %cst_19 = arith.constant dense<0.000000e+00> : vector<1x128xf32>
    %20 = tpu.matmul %19, %18, %cst_19 {dimension_numbers = #tpu.dot_dimension_numbers<[1], [0], [0], [1], [0, 0, 1, 1], [], []>} : vector<1x32xf32>, vector<32x128xf32>, vector<1x128xf32> -> vector<1x128xf32>
    %c0_20 = arith.constant 0 : index
    %21 = memref.load %arg9[%c0_20] : memref<1xf32, #tpu.memory_space<smem>>
    %22 = vector.broadcast %21 : f32 to vector<1x128xf32>
    %23 = arith.addf %20, %22 : vector<1x128xf32>
    %c0_21 = arith.constant 0 : index
    %c0_22 = arith.constant 0 : index
    %24 = vector.load %arg10[%c0_21, %c0_22] : memref<1x128xf32, #tpu.memory_space<vmem>>, vector<1x128xf32>
    tpu.vector_store %arg10[%c0_21, %c0_22], %23 {strides = array<i32>} : memref<1x128xf32, #tpu.memory_space<vmem>>, vector<1x128xf32>,
    return
  }
  func.func @transform_0(%arg0: i32) -> (i32, i32) {
    %c0_i32 = arith.constant 0 : i32
    %c0_i32_0 = arith.constant 0 : i32
    return %arg0, %c0_i32 : i32, i32
  }
  func.func @transform_1(%arg0: i32) -> (i32, i32) {
    %c0_i32 = arith.constant 0 : i32
    %c0_i32_0 = arith.constant 0 : i32
    return %arg0, %c0_i32 : i32, i32
  }
  func.func @transform_2(%arg0: i32) -> (i32, i32) {
    %c0_i32 = arith.constant 0 : i32
    %c0_i32_0 = arith.constant 0 : i32
    %c0_i32_1 = arith.constant 0 : i32
    return %c0_i32, %c0_i32_0 : i32, i32
  }
  func.func @transform_3(%arg0: i32) -> (i32, i32) {
    %c0_i32 = arith.constant 0 : i32
    %c0_i32_0 = arith.constant 0 : i32
    %c0_i32_1 = arith.constant 0 : i32
    return %c0_i32, %c0_i32_0 : i32, i32
  }
  func.func @transform_4(%arg0: i32) -> (i32, i32) {
    %c0_i32 = arith.constant 0 : i32
    %c0_i32_0 = arith.constant 0 : i32
    %c0_i32_1 = arith.constant 0 : i32
    return %c0_i32, %c0_i32_0 : i32, i32
  }
  func.func @transform_5(%arg0: i32) -> (i32, i32) {
    %c0_i32 = arith.constant 0 : i32
    %c0_i32_0 = arith.constant 0 : i32
    %c0_i32_1 = arith.constant 0 : i32
    return %c0_i32, %c0_i32_0 : i32, i32
  }
  func.func @transform_6(%arg0: i32) -> (i32, i32) {
    %c0_i32 = arith.constant 0 : i32
    %c0_i32_0 = arith.constant 0 : i32
    %c0_i32_1 = arith.constant 0 : i32
    return %c0_i32, %c0_i32_0 : i32, i32
  }
  func.func @transform_7(%arg0: i32) -> (i32, i32) {
    %c0_i32 = arith.constant 0 : i32
    %c0_i32_0 = arith.constant 0 : i32
    %c0_i32_1 = arith.constant 0 : i32
    return %c0_i32, %c0_i32_0 : i32, i32
  }
  func.func @transform_8(%arg0: i32) -> i32 {
    %c0_i32 = arith.constant 0 : i32
    %c0_i32_0 = arith.constant 0 : i32
    return %c0_i32 : i32
  }
  func.func @transform_9(%arg0: i32) -> (i32, i32) {
    %c0_i32 = arith.constant 0 : i32
    %c0_i32_0 = arith.constant 0 : i32
    return %c0_i32, %arg0 : i32, i32
  }
}

</mosaic_0001>

<llo_original>
// kernel: tpu_custom_call.1
$region0: #{tpu_custom_call.1}
  #allocation0 [shape = 'u32[]', space=smem, size = 0x4, offset = 0x4, fixed_abs, tag = 'smem constant byte address 0x4 - core index']
  #allocation1 [shape = 'u32[144,128]{1,0:T(1,128)}', space=vmem, size = 0x12000, scoped, tag = 'internal scratch']
  #allocation2 [shape = 'f32[1]{0:T(128)S(6)}', space=smem, size = 0x200, scoped, tag = 'scoped memory for tpu_custom_call.1']
  %s0 = inlined_call_operand.vmem [shape: f32[128,16], index: 0, kind: input, shape index: {}]
  %s1 = inlined_call_operand.vmem [shape: f32[128,8], index: 1, kind: input, shape index: {}]
  %s2 = inlined_call_operand.vmem [shape: f32[32,16], index: 2, kind: input, shape index: {}]
  %s3 = inlined_call_operand.vmem [shape: f32[32,8], index: 3, kind: input, shape index: {}]
  %s4 = inlined_call_operand.vmem [shape: f32[32,1], index: 4, kind: input, shape index: {}]
  %s5 = inlined_call_operand.vmem [shape: f32[32,32], index: 5, kind: input, shape index: {}]
  %s6 = inlined_call_operand.vmem [shape: f32[32,1], index: 6, kind: input, shape index: {}]
  %s7 = inlined_call_operand.vmem [shape: f32[1,32], index: 7, kind: input, shape index: {}]
  %s8 = inlined_call_operand.<no memory space> [shape: f32[1], index: 8, kind: input, shape index: {}]
  %s9 = inlined_call_operand.hbm [shape: f32[1,128], index: 9, kind: output, shape index: {}]
  %s10 = sld [smem:[#allocation0]]
  $region46: #{tpu_custom_call.1} parent=0
    _
  %s12 = ssub.s32 1, %s10
  %s13 = scalar_select 0, %s12, %s10
  %14 = sst [smem:[#allocation2]] %s8
  $region1: #{tpu_custom_call.1} parent=0
    #allocation3 [shape = 'u8[512]{0}', space=vmem, size = 0x400, scoped, tag = 'output window, operand 0, single buffered']
    #allocation4 [shape = 's32[1]{0}', space=sflag, size = 0x4, scoped, tag = 'scoped memory for tpu_custom_call.1']
    %15 = vsyncpa [#allocation4], 0
    // Predicated region
    $region2: #{tpu_custom_call.1} parent=1 // pred_check
      _
    $region3: #{tpu_custom_call.1} parent=1 // pred_check_branch
      %17 = sbr.rel (0) target = $region5
    $region4: #{tpu_custom_call.1} parent=1 // pred_region
      _
    $region5: #{tpu_custom_call.1} parent=1 // pred_fallthru
      _
    // Predicated region
    $region6: #{tpu_custom_call.1} parent=1 // pred_check
      _
    $region7: #{tpu_custom_call.1} parent=1 // pred_check_branch
      %19 = sbr.rel (0) target = $region9
    $region8: #{tpu_custom_call.1} parent=1 // pred_region
      _
    $region9: #{tpu_custom_call.1} parent=1 // pred_fallthru
      _
    // Predicated region
    $region10: #{tpu_custom_call.1} parent=1 // pred_check
      _
    $region11: #{tpu_custom_call.1} parent=1 // pred_check_branch
      %21 = sbr.rel (0) target = $region13
    $region12: #{tpu_custom_call.1} parent=1 // pred_region
      _
    $region13: #{tpu_custom_call.1} parent=1 // pred_fallthru
      _
    // Predicated region
    $region14: #{tpu_custom_call.1} parent=1 // pred_check
      _
    $region15: #{tpu_custom_call.1} parent=1 // pred_check_branch
      %23 = sbr.rel (0) target = $region17
    $region16: #{tpu_custom_call.1} parent=1 // pred_region
      _
    $region17: #{tpu_custom_call.1} parent=1 // pred_fallthru
      _
    // Predicated region
    $region18: #{tpu_custom_call.1} parent=1 // pred_check
      _
    $region19: #{tpu_custom_call.1} parent=1 // pred_check_branch
      %25 = sbr.rel (0) target = $region21
    $region20: #{tpu_custom_call.1} parent=1 // pred_region
      _
    $region21: #{tpu_custom_call.1} parent=1 // pred_fallthru
      _
    // Predicated region
    $region22: #{tpu_custom_call.1} parent=1 // pred_check
      _
    $region23: #{tpu_custom_call.1} parent=1 // pred_check_branch
      %27 = sbr.rel (0) target = $region25
    $region24: #{tpu_custom_call.1} parent=1 // pred_region
      _
    $region25: #{tpu_custom_call.1} parent=1 // pred_fallthru
      _
    // Predicated region
    $region26: #{tpu_custom_call.1} parent=1 // pred_check
      _
    $region27: #{tpu_custom_call.1} parent=1 // pred_check_branch
      %29 = sbr.rel (0) target = $region29
    $region28: #{tpu_custom_call.1} parent=1 // pred_region
      _
    $region29: #{tpu_custom_call.1} parent=1 // pred_fallthru
      _
    // Predicated region
    $region30: #{tpu_custom_call.1} parent=1 // pred_check
      _
    $region31: #{tpu_custom_call.1} parent=1 // pred_check_branch
      %31 = sbr.rel (0) target = $region33
    $region32: #{tpu_custom_call.1} parent=1 // pred_region
      _
    $region33: #{tpu_custom_call.1} parent=1 // pred_fallthru
      _
    // Predicated region
    $region34: #{tpu_custom_call.1} parent=1 // pred_check
      _
    $region35: #{tpu_custom_call.1} parent=1 // pred_check_branch
      %33 = sbr.rel (0) target = $region37
    $region36: #{tpu_custom_call.1} parent=1 // pred_region
      _
    $region37: #{tpu_custom_call.1} parent=1 // pred_fallthru
      _
    %v34 = vld [vmem:[%s2] sm:$0xff]
    %v35 = vld [vmem:[%s2 + $0x8] sm:$0xff]
    %v36 = vld [vmem:[%s2 + $0x10] sm:$0xff]
    %v37 = vld [vmem:[%s2 + $0x18] sm:$0xff]
    %v38 = vld [vmem:[%s0] sm:$0xff]
    %v39 = vld [vmem:[%s0 + $0x8] sm:$0xff]
    %v40 = vld [vmem:[%s0 + $0x10] sm:$0xff]
    %v41 = vld [vmem:[%s0 + $0x18] sm:$0xff]
    %v42 = vld [vmem:[%s0 + $0x20] sm:$0xff]
    %v43 = vld [vmem:[%s0 + $0x28] sm:$0xff]
    %v44 = vld [vmem:[%s0 + $0x30] sm:$0xff]
    %v45 = vld [vmem:[%s0 + $0x38] sm:$0xff]
    %v46 = vld [vmem:[%s0 + $0x40] sm:$0xff]
    %v47 = vld [vmem:[%s0 + $0x48] sm:$0xff]
    %v48 = vld [vmem:[%s0 + $0x50] sm:$0xff]
    %v49 = vld [vmem:[%s0 + $0x58] sm:$0xff]
    %v50 = vld [vmem:[%s0 + $0x60] sm:$0xff]
    %v51 = vld [vmem:[%s0 + $0x68] sm:$0xff]
    %v52 = vld [vmem:[%s0 + $0x70] sm:$0xff]
    %v53 = vld [vmem:[%s0 + $0x78] sm:$0xff]
    %v54 = vld [vmem:[%s3] sm:$0xff]
    %v55 = vld [vmem:[%s3 + $0x8] sm:$0xff]
    %v56 = vld [vmem:[%s3 + $0x10] sm:$0xff]
    %v57 = vld [vmem:[%s3 + $0x18] sm:$0xff]
    %v58 = vld [vmem:[%s1] sm:$0xff]
    %v59 = vld [vmem:[%s1 + $0x8] sm:$0xff]
    %v60 = vld [vmem:[%s1 + $0x10] sm:$0xff]
    %v61 = vld [vmem:[%s1 + $0x18] sm:$0xff]
    %v62 = vld [vmem:[%s1 + $0x20] sm:$0xff]
    %v63 = vld [vmem:[%s1 + $0x28] sm:$0xff]
    %v64 = vld [vmem:[%s1 + $0x30] sm:$0xff]
    %v65 = vld [vmem:[%s1 + $0x38] sm:$0xff]
    %v66 = vld [vmem:[%s1 + $0x40] sm:$0xff]
    %v67 = vld [vmem:[%s1 + $0x48] sm:$0xff]
    %v68 = vld [vmem:[%s1 + $0x50] sm:$0xff]
    %v69 = vld [vmem:[%s1 + $0x58] sm:$0xff]
    %v70 = vld [vmem:[%s1 + $0x60] sm:$0xff]
    %v71 = vld [vmem:[%s1 + $0x68] sm:$0xff]
    %v72 = vld [vmem:[%s1 + $0x70] sm:$0xff]
    %v73 = vld [vmem:[%s1 + $0x78] sm:$0xff]
    %vm74 = vcmask 64512
    %v76 = vsel %vm74, %v54, 0
    %v79 = vsel %vm74, %v55, 0
    %v82 = vsel %vm74, %v56, 0
    %v85 = vsel %vm74, %v57, 0
    %v88 = vsel %vm74, %v58, 0
    %v91 = vsel %vm74, %v59, 0
    %v94 = vsel %vm74, %v60, 0
    %v97 = vsel %vm74, %v61, 0
    %v100 = vsel %vm74, %v62, 0
    %v103 = vsel %vm74, %v63, 0
    %v106 = vsel %vm74, %v64, 0
    %v109 = vsel %vm74, %v65, 0
    %v112 = vsel %vm74, %v66, 0
    %v115 = vsel %vm74, %v67, 0
    %v118 = vsel %vm74, %v68, 0
    %v121 = vsel %vm74, %v69, 0
    %v124 = vsel %vm74, %v70, 0
    %v127 = vsel %vm74, %v71, 0
    %v130 = vsel %vm74, %v72, 0
    %v133 = vsel %vm74, %v73, 0
    %135 = vmatprep.subr.mxu0 0.0
    %136 = vmatpush1.xpose.msra.mxu0 %v88
    %137 = vmatprep.subr.mxu0 0.0
    %138 = vmatpush1.xpose.msra.mxu0 %v91
    %139 = vmatprep.subr.mxu0 0.0
    %140 = vmatpush1.xpose.msra.mxu0 %v94
    %141 = vmatprep.subr.mxu0 0.0
    %142 = vmatpush1.xpose.msra.mxu0 %v97
    %143 = vmatprep.subr.mxu0 0.0
    %144 = vmatpush1.xpose.msra.mxu0 %v100
    %145 = vmatprep.subr.mxu0 0.0
    %146 = vmatpush1.xpose.msra.mxu0 %v103
    %147 = vmatprep.subr.mxu0 0.0
    %148 = vmatpush1.xpose.msra.mxu0 %v106
    %149 = vmatprep.subr.mxu0 0.0
    %150 = vmatpush1.xpose.msra.mxu0 %v109
    %151 = vmatprep.subr.mxu0 0.0
    %152 = vmatpush1.xpose.msra.mxu0 %v112
    %153 = vmatprep.subr.mxu0 0.0
    %154 = vmatpush1.xpose.msra.mxu0 %v115
    %155 = vmatprep.subr.mxu0 0.0
    %156 = vmatpush1.xpose.msra.mxu0 %v118
    %157 = vmatprep.subr.mxu0 0.0
    %158 = vmatpush1.xpose.msra.mxu0 %v121
    %159 = vmatprep.subr.mxu0 0.0
    %160 = vmatpush1.xpose.msra.mxu0 %v124
    %161 = vmatprep.subr.mxu0 0.0
    %162 = vmatpush1.xpose.msra.mxu0 %v127
    %163 = vmatprep.subr.mxu0 0.0
    %164 = vmatpush1.xpose.msra.mxu0 %v130
    %165 = vmatprep.subr.mxu0 0.0
    %166 = vmatpush1.xpose.msra.mxu0 %v133
    %167 = vmatprep.subr.mxu0 0.0
    %168 = vmatpush1.xpose.msra.mxu0 0.0
    %169 = vmatprep.subr.mxu0 0.0
    %170 = vmatpush1.xpose.msra.mxu0 0.0
    %171 = vmatprep.subr.mxu0 0.0
    %172 = vmatpush1.xpose.msra.mxu0 0.0
    %173 = vmatprep.subr.mxu0 0.0
    %174 = vmatpush1.xpose.msra.mxu0 0.0
    %175 = vmatprep.subr.mxu0 0.0
    %176 = vmatpush1.xpose.msra.mxu0 0.0
    %177 = vmatprep.subr.mxu0 0.0
    %178 = vmatpush1.xpose.msra.mxu0 0.0
    %179 = vmatprep.subr.mxu0 0.0
    %180 = vmatpush1.xpose.msra.mxu0 0.0
    %181 = vmatprep.subr.mxu0 0.0
    %182 = vmatpush1.xpose.msra.mxu0 0.0
    %183 = vmatprep.subr.mxu0 0.0
    %184 = vmatpush1.xpose.msra.mxu0 0.0
    %185 = vmatprep.subr.mxu0 0.0
    %186 = vmatpush1.xpose.msra.mxu0 0.0
    %187 = vmatprep.subr.mxu0 0.0
    %188 = vmatpush1.xpose.msra.mxu0 0.0
    %189 = vmatprep.subr.mxu0 0.0
    %190 = vmatpush1.xpose.msra.mxu0 0.0
    %191 = vmatprep.subr.mxu0 0.0
    %192 = vmatpush1.xpose.msra.mxu0 0.0
    %193 = vmatprep.subr.mxu0 0.0
    %194 = vmatpush1.xpose.msra.mxu0 0.0
    %195 = vmatprep.subr.mxu0 0.0
    %196 = vmatpush1.xpose.msra.mxu0 0.0
    %197 = vmatprep.subr.mxu0 0.0
    %198 = vmatpush1.xpose.msra.mxu0 0.0
    %199 = vmatprep.mubr.f32.mxu0 0.0
    %200 = vmatmul.mubr.f32.gmra.mrb[0].mxu0 %v76
    %v201 = vpop.f32.mrb[0].mxu0
    %v202 = vadd.f32 0.0, %v201
    %v203 = vpop.f32.mrb[0].mxu0
    %204 = vmatprep.mubr.f32.mxu0 0.0
    %205 = vmatmul.mubr.f32.gmra.mrb[0].mxu0 %v79
    %v206 = vpop.f32.mrb[0].mxu0
    %v207 = vadd.f32 0.0, %v206
    %v208 = vpop.f32.mrb[0].mxu0
    %209 = vmatprep.mubr.f32.mxu0 0.0
    %210 = vmatmul.mubr.f32.gmra.mrb[0].mxu0 %v82
    %v211 = vpop.f32.mrb[0].mxu0
    %v212 = vadd.f32 0.0, %v211
    %v213 = vpop.f32.mrb[0].mxu0
    %214 = vmatprep.mubr.f32.mxu0 0.0
    %215 = vmatmul.mubr.f32.gmra.mrb[0].mxu0 %v85
    %v216 = vpop.f32.mrb[0].mxu0
    %v217 = vadd.f32 0.0, %v216
    %v218 = vpop.f32.mrb[0].mxu0
    %219 = vdwg.mxu0
    %vm220 = vcmask 130048
    %v222 = vsel %vm220, %v34, 0
    %v225 = vsel %vm220, %v35, 0
    %v228 = vsel %vm220, %v36, 0
    %v231 = vsel %vm220, %v37, 0
    %v234 = vsel %vm220, %v38, 0
    %v237 = vsel %vm220, %v39, 0
    %v240 = vsel %vm220, %v40, 0
    %v243 = vsel %vm220, %v41, 0
    %v246 = vsel %vm220, %v42, 0
    %v249 = vsel %vm220, %v43, 0
    %v252 = vsel %vm220, %v44, 0
    %v255 = vsel %vm220, %v45, 0
    %v258 = vsel %vm220, %v46, 0
    %v261 = vsel %vm220, %v47, 0
    %v264 = vsel %vm220, %v48, 0
    %v267 = vsel %vm220, %v49, 0
    %v270 = vsel %vm220, %v50, 0
    %v273 = vsel %vm220, %v51, 0
    %v276 = vsel %vm220, %v52, 0
    %v279 = vsel %vm220, %v53, 0
    %281 = vmatprep.subr.mxu0 0.0
    %282 = vmatpush1.xpose.msra.mxu0 %v234
    %283 = vmatprep.subr.mxu0 0.0
    %284 = vmatpush1.xpose.msra.mxu0 %v237
    %285 = vmatprep.subr.mxu0 0.0
    %286 = vmatpush1.xpose.msra.mxu0 %v240
    %287 = vmatprep.subr.mxu0 0.0
    %288 = vmatpush1.xpose.msra.mxu0 %v243
    %289 = vmatprep.subr.mxu0 0.0
    %290 = vmatpush1.xpose.msra.mxu0 %v246
    %291 = vmatprep.subr.mxu0 0.0
    %292 = vmatpush1.xpose.msra.mxu0 %v249
    %293 = vmatprep.subr.mxu0 0.0
    %294 = vmatpush1.xpose.msra.mxu0 %v252
    %295 = vmatprep.subr.mxu0 0.0
    %296 = vmatpush1.xpose.msra.mxu0 %v255
    %297 = vmatprep.subr.mxu0 0.0
    %298 = vmatpush1.xpose.msra.mxu0 %v258
    %299 = vmatprep.subr.mxu0 0.0
    %300 = vmatpush1.xpose.msra.mxu0 %v261
    %301 = vmatprep.subr.mxu0 0.0
    %302 = vmatpush1.xpose.msra.mxu0 %v264
    %303 = vmatprep.subr.mxu0 0.0
    %304 = vmatpush1.xpose.msra.mxu0 %v267
    %305 = vmatprep.subr.mxu0 0.0
    %306 = vmatpush1.xpose.msra.mxu0 %v270
    %307 = vmatprep.subr.mxu0 0.0
    %308 = vmatpush1.xpose.msra.mxu0 %v273
    %309 = vmatprep.subr.mxu0 0.0
    %310 = vmatpush1.xpose.msra.mxu0 %v276
    %311 = vmatprep.subr.mxu0 0.0
    %312 = vmatpush1.xpose.msra.mxu0 %v279
    %313 = vmatprep.subr.mxu0 0.0
    %314 = vmatpush1.xpose.msra.mxu0 0.0
    %315 = vmatprep.subr.mxu0 0.0
    %316 = vmatpush1.xpose.msra.mxu0 0.0
    %317 = vmatprep.subr.mxu0 0.0
    %318 = vmatpush1.xpose.msra.mxu0 0.0
    %319 = vmatprep.subr.mxu0 0.0
    %320 = vmatpush1.xpose.msra.mxu0 0.0
    %321 = vmatprep.subr.mxu0 0.0
    %322 = vmatpush1.xpose.msra.mxu0 0.0
    %323 = vmatprep.subr.mxu0 0.0
    %324 = vmatpush1.xpose.msra.mxu0 0.0
    %325 = vmatprep.subr.mxu0 0.0
    %326 = vmatpush1.xpose.msra.mxu0 0.0
    %327 = vmatprep.subr.mxu0 0.0
    %328 = vmatpush1.xpose.msra.mxu0 0.0
    %329 = vmatprep.subr.mxu0 0.0
    %330 = vmatpush1.xpose.msra.mxu0 0.0
    %331 = vmatprep.subr.mxu0 0.0
    %332 = vmatpush1.xpose.msra.mxu0 0.0
    %333 = vmatprep.subr.mxu0 0.0
    %334 = vmatpush1.xpose.msra.mxu0 0.0
    %335 = vmatprep.subr.mxu0 0.0
    %336 = vmatpush1.xpose.msra.mxu0 0.0
    %337 = vmatprep.subr.mxu0 0.0
    %338 = vmatpush1.xpose.msra.mxu0 0.0
    %339 = vmatprep.subr.mxu0 0.0
    %340 = vmatpush1.xpose.msra.mxu0 0.0
    %341 = vmatprep.subr.mxu0 0.0
    %342 = vmatpush1.xpose.msra.mxu0 0.0
    %343 = vmatprep.subr.mxu0 0.0
    %344 = vmatpush1.xpose.msra.mxu0 0.0
    %345 = vmatprep.mubr.f32.mxu0 0.0
    %346 = vmatmul.mubr.f32.gmra.mrb[0].mxu0 %v222
    %v347 = vpop.f32.mrb[0].mxu0
    %v348 = vadd.f32 %v202, %v347
    %v349 = vpop.f32.mrb[0].mxu0
    %350 = vmatprep.mubr.f32.mxu0 0.0
    %351 = vmatmul.mubr.f32.gmra.mrb[0].mxu0 %v225
    %v352 = vpop.f32.mrb[0].mxu0
    %v353 = vadd.f32 %v207, %v352
    %v354 = vpop.f32.mrb[0].mxu0
    %355 = vmatprep.mubr.f32.mxu0 0.0
    %356 = vmatmul.mubr.f32.gmra.mrb[0].mxu0 %v228
    %v357 = vpop.f32.mrb[0].mxu0
    %v358 = vadd.f32 %v212, %v357
    %v359 = vpop.f32.mrb[0].mxu0
    %360 = vmatprep.mubr.f32.mxu0 0.0
    %361 = vmatmul.mubr.f32.gmra.mrb[0].mxu0 %v231
    %v362 = vpop.f32.mrb[0].mxu0
    %v363 = vadd.f32 %v217, %v362
    %v364 = vpop.f32.mrb[0].mxu0
    %365 = vdwg.mxu0
    %v366 = vld [vmem:[%s4] sm:$0xff]
    %v367 = vld [vmem:[%s4 + $0x8] sm:$0xff]
    %v368 = vld [vmem:[%s4 + $0x10] sm:$0xff]
    %v369 = vld [vmem:[%s4 + $0x18] sm:$0xff]
    %371 = vset.pattern.permute.xlu0 0
    %372 = vperm.xlu0 %371, %v366
    %v373 = vpop.permute.xlu0 %372
    %376 = vset.pattern.permute.xlu0 0
    %377 = vperm.xlu0 %376, %v367
    %v378 = vpop.permute.xlu0 %377
    %381 = vset.pattern.permute.xlu0 0
    %382 = vperm.xlu0 %381, %v368
    %v383 = vpop.permute.xlu0 %382
    %386 = vset.pattern.permute.xlu0 0
    %387 = vperm.xlu0 %386, %v369
    %v388 = vpop.permute.xlu0 %387
    %v390 = vadd.f32 %v348, %v373
    %v391 = vadd.f32 %v353, %v378
    %v392 = vadd.f32 %v358, %v383
    %v393 = vadd.f32 %v363, %v388
    %v394 = vmax.f32 %v390, 0.0
    %v395 = vmax.f32 %v391, 0.0
    %v396 = vmax.f32 %v392, 0.0
    %v397 = vmax.f32 %v393, 0.0
    %v398 = vld [vmem:[%s5] sm:$0xff]
    %v399 = vld [vmem:[%s5 + $0x8] sm:$0xff]
    %v400 = vld [vmem:[%s5 + $0x10] sm:$0xff]
    %v401 = vld [vmem:[%s5 + $0x18] sm:$0xff]
    %v402 = vld [vmem:[%s6] sm:$0xff]
    %v403 = vld [vmem:[%s6 + $0x8] sm:$0xff]
    %v404 = vld [vmem:[%s6 + $0x10] sm:$0xff]
    %v405 = vld [vmem:[%s6 + $0x18] sm:$0xff]
    %407 = vset.pattern.permute.xlu0 0
    %408 = vperm.xlu0 %407, %v402
    %v409 = vpop.permute.xlu0 %408
    %412 = vset.pattern.permute.xlu0 0
    %413 = vperm.xlu0 %412, %v403
    %v414 = vpop.permute.xlu0 %413
    %417 = vset.pattern.permute.xlu0 0
    %418 = vperm.xlu0 %417, %v404
    %v419 = vpop.permute.xlu0 %418
    %422 = vset.pattern.permute.xlu0 0
    %423 = vperm.xlu0 %422, %v405
    %v424 = vpop.permute.xlu0 %423
    %vm426 = vcmask 261120
    %v428 = vsel %vm426, %v398, 0
    %v431 = vsel %vm426, %v399, 0
    %v434 = vsel %vm426, %v400, 0
    %v437 = vsel %vm426, %v401, 0
    %439 = vmatprep.subr.mxu0 0.0
    %440 = vmatpush1.msra.mxu0 %v394
    %441 = vmatprep.subr.mxu0 0.0
    %442 = vmatpush1.msra.mxu0 %v395
    %443 = vmatprep.subr.mxu0 0.0
    %444 = vmatpush1.msra.mxu0 %v396
    %445 = vmatprep.subr.mxu0 0.0
    %446 = vmatpush1.msra.mxu0 %v397
    %447 = vmatprep.subr.mxu0 0.0
    %448 = vmatpush1.msra.mxu0 0.0
    %449 = vmatprep.subr.mxu0 0.0
    %450 = vmatpush1.msra.mxu0 0.0
    %451 = vmatprep.subr.mxu0 0.0
    %452 = vmatpush1.msra.mxu0 0.0
    %453 = vmatprep.subr.mxu0 0.0
    %454 = vmatpush1.msra.mxu0 0.0
    %455 = vmatprep.subr.mxu0 0.0
    %456 = vmatpush1.msra.mxu0 0.0
    %457 = vmatprep.subr.mxu0 0.0
    %458 = vmatpush1.msra.mxu0 0.0
    %459 = vmatprep.subr.mxu0 0.0
    %460 = vmatpush1.msra.mxu0 0.0
    %461 = vmatprep.subr.mxu0 0.0
    %462 = vmatpush1.msra.mxu0 0.0
    %463 = vmatprep.subr.mxu0 0.0
    %464 = vmatpush1.msra.mxu0 0.0
    %465 = vmatprep.subr.mxu0 0.0
    %466 = vmatpush1.msra.mxu0 0.0
    %467 = vmatprep.subr.mxu0 0.0
    %468 = vmatpush1.msra.mxu0 0.0
    %469 = vmatprep.subr.mxu0 0.0
    %470 = vmatpush1.msra.mxu0 0.0
    %471 = vmatprep.subr.mxu0 0.0
    %472 = vmatpush1.msra.mxu0 0.0
    %473 = vmatprep.subr.mxu0 0.0
    %474 = vmatpush1.msra.mxu0 0.0
    %475 = vmatprep.subr.mxu0 0.0
    %476 = vmatpush1.msra.mxu0 0.0
    %477 = vmatprep.subr.mxu0 0.0
    %478 = vmatpush1.msra.mxu0 0.0
    %479 = vmatprep.subr.mxu0 0.0
    %480 = vmatpush1.msra.mxu0 0.0
    %481 = vmatprep.subr.mxu0 0.0
    %482 = vmatpush1.msra.mxu0 0.0
    %483 = vmatprep.subr.mxu0 0.0
    %484 = vmatpush1.msra.mxu0 0.0
    %485 = vmatprep.subr.mxu0 0.0
    %486 = vmatpush1.msra.mxu0 0.0
    %487 = vmatprep.subr.mxu0 0.0
    %488 = vmatpush1.msra.mxu0 0.0
    %489 = vmatprep.subr.mxu0 0.0
    %490 = vmatpush1.msra.mxu0 0.0
    %491 = vmatprep.subr.mxu0 0.0
    %492 = vmatpush1.msra.mxu0 0.0
    %493 = vmatprep.subr.mxu0 0.0
    %494 = vmatpush1.msra.mxu0 0.0
    %495 = vmatprep.subr.mxu0 0.0
    %496 = vmatpush1.msra.mxu0 0.0
    %497 = vmatprep.subr.mxu0 0.0
    %498 = vmatpush1.msra.mxu0 0.0
    %499 = vmatprep.subr.mxu0 0.0
    %500 = vmatpush1.msra.mxu0 0.0
    %501 = vmatprep.subr.mxu0 0.0
    %502 = vmatpush1.msra.mxu0 0.0
    %503 = vmatprep.mubr.f32.mxu0 0.0
    %504 = vmatmul.mubr.f32.gmra.mrb[0].mxu0 %v428
    %v505 = vpop.f32.mrb[0].mxu0
    %v506 = vadd.f32 %v409, %v505
    %v507 = vpop.f32.mrb[0].mxu0
    %508 = vmatprep.mubr.f32.mxu0 0.0
    %509 = vmatmul.mubr.f32.gmra.mrb[0].mxu0 %v431
    %v510 = vpop.f32.mrb[0].mxu0
    %v511 = vadd.f32 %v414, %v510
    %v512 = vpop.f32.mrb[0].mxu0
    %513 = vmatprep.mubr.f32.mxu0 0.0
    %514 = vmatmul.mubr.f32.gmra.mrb[0].mxu0 %v434
    %v515 = vpop.f32.mrb[0].mxu0
    %v516 = vadd.f32 %v419, %v515
    %v517 = vpop.f32.mrb[0].mxu0
    %518 = vmatprep.mubr.f32.mxu0 0.0
    %519 = vmatmul.mubr.f32.gmra.mrb[0].mxu0 %v437
    %v520 = vpop.f32.mrb[0].mxu0
    %v521 = vadd.f32 %v424, %v520
    %v522 = vpop.f32.mrb[0].mxu0
    %523 = vdwg.mxu0
    %v524 = vmax.f32 %v506, 0.0
    %v525 = vmax.f32 %v511, 0.0
    %v526 = vmax.f32 %v516, 0.0
    %v527 = vmax.f32 %v521, 0.0
    %v528 = vld [vmem:[%s7] sm:$0x1]
    %s529 = sld [smem:[#allocation2]]
    %v530 = vstv %s529
    %v532 = vsel %vm426, %v528, 0
    %534 = vmatprep.subr.mxu0 0.0
    %535 = vmatpush1.msra.mxu0 %v524
    %536 = vmatprep.subr.mxu0 0.0
    %537 = vmatpush1.msra.mxu0 %v525
    %538 = vmatprep.subr.mxu0 0.0
    %539 = vmatpush1.msra.mxu0 %v526
    %540 = vmatprep.subr.mxu0 0.0
    %541 = vmatpush1.msra.mxu0 %v527
    %542 = vmatprep.subr.mxu0 0.0
    %543 = vmatpush1.msra.mxu0 0.0
    %544 = vmatprep.subr.mxu0 0.0
    %545 = vmatpush1.msra.mxu0 0.0
    %546 = vmatprep.subr.mxu0 0.0
    %547 = vmatpush1.msra.mxu0 0.0
    %548 = vmatprep.subr.mxu0 0.0
    %549 = vmatpush1.msra.mxu0 0.0
    %550 = vmatprep.subr.mxu0 0.0
    %551 = vmatpush1.msra.mxu0 0.0
    %552 = vmatprep.subr.mxu0 0.0
    %553 = vmatpush1.msra.mxu0 0.0
    %554 = vmatprep.subr.mxu0 0.0
    %555 = vmatpush1.msra.mxu0 0.0
    %556 = vmatprep.subr.mxu0 0.0
    %557 = vmatpush1.msra.mxu0 0.0
    %558 = vmatprep.subr.mxu0 0.0
    %559 = vmatpush1.msra.mxu0 0.0
    %560 = vmatprep.subr.mxu0 0.0
    %561 = vmatpush1.msra.mxu0 0.0
    %562 = vmatprep.subr.mxu0 0.0
    %563 = vmatpush1.msra.mxu0 0.0
    %564 = vmatprep.subr.mxu0 0.0
    %565 = vmatpush1.msra.mxu0 0.0
    %566 = vmatprep.subr.mxu0 0.0
    %567 = vmatpush1.msra.mxu0 0.0
    %568 = vmatprep.subr.mxu0 0.0
    %569 = vmatpush1.msra.mxu0 0.0
    %570 = vmatprep.subr.mxu0 0.0
    %571 = vmatpush1.msra.mxu0 0.0
    %572 = vmatprep.subr.mxu0 0.0
    %573 = vmatpush1.msra.mxu0 0.0
    %574 = vmatprep.subr.mxu0 0.0
    %575 = vmatpush1.msra.mxu0 0.0
    %576 = vmatprep.subr.mxu0 0.0
    %577 = vmatpush1.msra.mxu0 0.0
    %578 = vmatprep.subr.mxu0 0.0
    %579 = vmatpush1.msra.mxu0 0.0
    %580 = vmatprep.subr.mxu0 0.0
    %581 = vmatpush1.msra.mxu0 0.0
    %582 = vmatprep.subr.mxu0 0.0
    %583 = vmatpush1.msra.mxu0 0.0
    %584 = vmatprep.subr.mxu0 0.0
    %585 = vmatpush1.msra.mxu0 0.0
    %586 = vmatprep.subr.mxu0 0.0
    %587 = vmatpush1.msra.mxu0 0.0
    %588 = vmatprep.subr.mxu0 0.0
    %589 = vmatpush1.msra.mxu0 0.0
    %590 = vmatprep.subr.mxu0 0.0
    %591 = vmatpush1.msra.mxu0 0.0
    %592 = vmatprep.subr.mxu0 0.0
    %593 = vmatpush1.msra.mxu0 0.0
    %594 = vmatprep.subr.mxu0 0.0
    %595 = vmatpush1.msra.mxu0 0.0
    %596 = vmatprep.subr.mxu0 0.0
    %597 = vmatpush1.msra.mxu0 0.0
    %598 = vmatprep.mubr.f32.mxu0 0.0
    %599 = vmatmul.mubr.f32.gmra.mrb[0].mxu0 %v532
    %v600 = vpop.f32.mrb[0].mxu0
    %v601 = vadd.f32 %v530, %v600
    %v602 = vpop.f32.mrb[0].mxu0
    %603 = vdwg.mxu0
    %604 = vst [vmem:[#allocation3] sm:$0x1] %v601
    // Predicated region
    $region38: #{tpu_custom_call.1} parent=1 // pred_check
      _
    $region39: #{tpu_custom_call.1} parent=1 // pred_check_branch
      %606 = sbr.rel (0) target = $region41
    $region40: #{tpu_custom_call.1} parent=1 // pred_region
      %s608 = ssub.s32 16, 16
      %609 = vsyncadd [#allocation4], %s608
      %s611 = sshll.u32 [#allocation3], 4
      %s612 = int_to_ptr.vmem [resolvable:$true] %s611
      %614 = dma.vmem_to_hbm [thread:$0]  %s612, 16, %s9, [#allocation4]
    $region41: #{tpu_custom_call.1} parent=1 // pred_fallthru
      _
    // Predicated region
    $region42: #{tpu_custom_call.1} parent=1 // pred_check
      _
    $region43: #{tpu_custom_call.1} parent=1 // pred_check_branch
      %616 = sbr.rel (0) target = $region45
    $region44: #{tpu_custom_call.1} parent=1 // pred_region
      %617 = dma.done [#allocation4], 16
    $region45: #{tpu_custom_call.1} parent=1 // pred_fallthru
      _
    %618 = vsyncpa [#allocation4], 1

</llo_original>
